<compile_context>
chip_gen: v6e
topology: v6e:2x2x1
jax: 0.10.0
libtpu: 0.0.40
codegen_flags: <defaults>
</compile_context>

<pallas_src>
import functools

import jax
import jax.numpy as jnp
from jax.experimental import pallas as pl
from jax.experimental.pallas import tpu as pltpu


def _round_up(x, m):
    return ((x + m - 1) // m) * m


def _layer_norm_kernel(x_ref, w_ref, b_ref, o_ref, *, eps, d_true, d_pad):
    # x_ref : [R, Dp]   rows to normalize (R = block_rows, Dp = padded D)
    # w_ref : [1, Dp]   LayerNorm weight (gamma), VMEM-resident
    # b_ref : [1, Dp]   LayerNorm bias   (beta),  VMEM-resident
    # o_ref : [R, Dp]
    x = x_ref[...].astype(jnp.float32)
    inv_d = 1.0 / float(d_true)

    # Mean over the true feature dim (padded lanes are zero -> contribute 0).
    mean = jnp.sum(x, axis=-1, keepdims=True) * inv_d
    xc = x - mean

    if d_pad != d_true:
        # Mask padded lanes out of the variance sum (xc != 0 there).
        lane = jax.lax.broadcasted_iota(jnp.int32, x.shape, dimension=x.ndim - 1)
        sq = jnp.where(lane < d_true, xc * xc, 0.0)
    else:
        sq = xc * xc

    var = jnp.sum(sq, axis=-1, keepdims=True) * inv_d   # biased variance (PyTorch)
    inv = jax.lax.rsqrt(var + eps)                       # EUP rsqrt

    w = w_ref[...].astype(jnp.float32)
    b = b_ref[...].astype(jnp.float32)
    o_ref[...] = (xc * inv * w + b).astype(o_ref.dtype)


def _choose_block_rows(n_rows, d_pad, dtype):
    """Byte-budget row tile, aligned to sublane packing, with >=2 grid steps."""
    itemsize = jnp.dtype(dtype).itemsize
    if itemsize >= 4:
        sub = 8
    elif itemsize == 2:
        sub = 16
    else:
        sub = 32

    target_bytes = 2 << 20  # ~2 MiB per I/O buffer: amortizes ~0.35us/step while
    #                         leaving room for 2x(in)+2x(out)+f32 temporaries on v5e.
    rows = max(sub, (target_bytes // max(1, d_pad * itemsize)) // sub * sub)
    rows = min(rows, _round_up(n_rows, sub))

    # Ensure >= 2 grid steps so the "parallel" axis shards across 2 TCs (v7x).
    if n_rows > sub and pl.cdiv(n_rows, rows) < 2:
        rows = max(sub, _round_up(pl.cdiv(n_rows, 2), sub))
    return rows


def norm_layer_forward(features, weight=None, bias=None, *, name="layer", eps=1e-5):
    """Pallas implementation of NormLayer.forward.

    features : [..., D]
    weight   : [D] or None (defaults to ones,  only for name == 'layer')
    bias     : [D] or None (defaults to zeros, only for name == 'layer')
    """
    if name == "none":
        # NormLayer('none') is a pure identity — no kernel required.
        return features
    if name != "layer":
        raise NotImplementedError(name)

    orig_shape = features.shape
    d = orig_shape[-1]
    if weight is None:
        weight = jnp.ones((d,), dtype=jnp.float32)
    if bias is None:
        bias = jnp.zeros((d,), dtype=jnp.float32)

    x2 = features.reshape(-1, d)            # row-major flatten of leading dims
    n = x2.shape[0]

    # Lane-dense feature dim: pad D up to a multiple of 128 so stores are
    # unmasked `vst`; the kernel divides by the true D and masks the var sum.
    d_pad = _round_up(d, 128)
    if d_pad != d:
        x2 = jnp.pad(x2, ((0, 0), (0, d_pad - d)))
        weight = jnp.pad(weight.reshape(-1), (0, d_pad - d))
        bias = jnp.pad(bias.reshape(-1), (0, d_pad - d))
    w2 = weight.reshape(1, d_pad)
    b2 = bias.reshape(1, d_pad)

    block_rows = _choose_block_rows(n, d_pad, features.dtype)
    grid = (pl.cdiv(n, block_rows),)

    # VMEM budget: 2x double-buffered I/O tiles + ~2 block-sized f32 temporaries
    # (x, xc) + params + headroom. Capped at 48 MiB (safe on v7x's 64 MiB/TC).
    io_bytes = block_rows * d_pad * jnp.dtype(features.dtype).itemsize
    f32_bytes = block_rows * d_pad * 4
    need = 4 * io_bytes + 2 * f32_bytes + 2 * d_pad * 4 + (2 << 20)
    vmem_limit = int(min(max(need, 32 << 20), 48 << 20))

    out = pl.pallas_call(
        functools.partial(_layer_norm_kernel, eps=float(eps), d_true=d, d_pad=d_pad),
        out_shape=jax.ShapeDtypeStruct((n, d_pad), features.dtype),
        grid=grid,
        in_specs=[
            pl.BlockSpec((block_rows, d_pad), lambda i: (i, 0)),
            pl.BlockSpec((1, d_pad), lambda i: (0, 0)),   # weight: VMEM-resident
            pl.BlockSpec((1, d_pad), lambda i: (0, 0)),   # bias:   VMEM-resident
        ],
        out_specs=pl.BlockSpec((block_rows, d_pad), lambda i: (i, 0)),
        compiler_params=pltpu.CompilerParams(
            dimension_semantics=("parallel",),   # shard row tiles across TCs (v7x)
            vmem_limit_bytes=vmem_limit,
        ),
    )(x2, w2, b2)

    if d_pad != d:
        out = out[:, :d]
    return out.reshape(orig_shape)


def _reference_layer_norm(features, weight, bias, eps=1e-5):
    x = features.astype(jnp.float32)
    mean = jnp.mean(x, axis=-1, keepdims=True)
    xc = x - mean
    var = jnp.mean(xc * xc, axis=-1, keepdims=True)
    y = xc * jax.lax.rsqrt(var + eps) * weight.astype(jnp.float32) + bias.astype(jnp.float32)
    return y.astype(features.dtype)


if __name__ == "__main__":
    # Small shapes consistent with the module: batch=8, seq=16, dim=128.
    B, T, DIM = 8, 16, 128

    key = jax.random.PRNGKey(0)
    k_x, k_w, k_b, k_x2 = jax.random.split(key, 4)

    features = jax.random.normal(k_x, (B, T, DIM), dtype=jnp.float32)
    weight = 1.0 + 0.1 * jax.random.normal(k_w, (DIM,), dtype=jnp.float32)
    bias = 0.1 * jax.random.normal(k_b, (DIM,), dtype=jnp.float32)

    # name == 'layer' path (Pallas kernel); N=128 rows -> grid of 2 row tiles.
    out = norm_layer_forward(features, weight, bias, name="layer", eps=1e-5)
    out = jax.block_until_ready(out)
    ref = _reference_layer_norm(features, weight, bias, eps=1e-5)
    assert out.shape == features.shape
    assert jnp.allclose(out, ref, atol=1e-5, rtol=1e-5), "LayerNorm mismatch vs reference"

    # Non-lane-dense feature dim exercises the padding/masked-variance path.
    D2 = 100
    f2 = jax.random.normal(k_x2, (B, T, D2), dtype=jnp.float32)
    out2 = jax.block_until_ready(norm_layer_forward(f2, name="layer", eps=1e-5))
    ref2 = _reference_layer_norm(f2, jnp.ones((D2,), jnp.float32),
                                 jnp.zeros((D2,), jnp.float32), eps=1e-5)
    assert jnp.allclose(out2, ref2, atol=1e-5, rtol=1e-5), "Padded-D LayerNorm mismatch"

    # name == 'none' path (identity, per the module spec).
    ident = norm_layer_forward(features, name="none")
    assert ident is features

    print("KERNEL_OK")
</pallas_src>

<mosaic_0001>
module attributes {stable_mosaic.version = 11 : i64} {
  func.func @_layer_norm_kernel(%arg0: i32, %arg1: memref<64x128xf32, #tpu.memory_space<vmem>>, %arg2: memref<1x128xf32, #tpu.memory_space<vmem>>, %arg3: memref<1x128xf32, #tpu.memory_space<vmem>>, %arg4: memref<64x128xf32, #tpu.memory_space<vmem>>) attributes {dimension_semantics = [#tpu.dimension_semantics<parallel>], iteration_bounds = array<i64: 2>, scalar_prefetch = 0 : i64, scratch_operands = 0 : i64, tpu.core_type = #tpu.core_type<tc>, window_params = [{transform_indices = @transform_0, window_bounds = array<i64: 64, 128>}, {pipeline_mode = #tpu.pipeline_mode<synchronous>, transform_indices = @transform_1, window_bounds = array<i64: 1, 128>}, {pipeline_mode = #tpu.pipeline_mode<synchronous>, transform_indices = @transform_2, window_bounds = array<i64: 1, 128>}, {transform_indices = @transform_3, window_bounds = array<i64: 64, 128>}]} {
    %c0 = arith.constant 0 : index
    %c0_0 = arith.constant 0 : index
    %0 = vector.load %arg1[%c0, %c0_0] : memref<64x128xf32, #tpu.memory_space<vmem>>, vector<64x128xf32>
    %cst = arith.constant dense<0.000000e+00> : vector<64xf32>
    %1 = vector.multi_reduction <add>, %0, %cst [1] : vector<64x128xf32> to vector<64xf32>
    %2 = vector.shape_cast %1 : vector<64xf32> to vector<64x1xf32>
    %cst_1 = arith.constant 7.812500e-03 : f32
    %3 = vector.broadcast %cst_1 : f32 to vector<64x1xf32>
    %4 = arith.mulf %2, %3 : vector<64x1xf32>
    %5 = vector.broadcast %4 : vector<64x1xf32> to vector<64x128xf32>
    %6 = arith.subf %0, %5 : vector<64x128xf32>
    %7 = arith.mulf %6, %6 : vector<64x128xf32>
    %cst_2 = arith.constant dense<0.000000e+00> : vector<64xf32>
    %8 = vector.multi_reduction <add>, %7, %cst_2 [1] : vector<64x128xf32> to vector<64xf32>
    %9 = vector.shape_cast %8 : vector<64xf32> to vector<64x1xf32>
    %cst_3 = arith.constant 7.812500e-03 : f32
    %10 = vector.broadcast %cst_3 : f32 to vector<64x1xf32>
    %11 = arith.mulf %9, %10 : vector<64x1xf32>
    %cst_4 = arith.constant 9.99999974E-6 : f32
    %12 = vector.broadcast %cst_4 : f32 to vector<64x1xf32>
    %13 = arith.addf %11, %12 : vector<64x1xf32>
    %14 = math.rsqrt %13 : vector<64x1xf32>
    %c0_5 = arith.constant 0 : index
    %c0_6 = arith.constant 0 : index
    %15 = vector.load %arg2[%c0_5, %c0_6] : memref<1x128xf32, #tpu.memory_space<vmem>>, vector<1x128xf32>
    %c0_7 = arith.constant 0 : index
    %c0_8 = arith.constant 0 : index
    %16 = vector.load %arg3[%c0_7, %c0_8] : memref<1x128xf32, #tpu.memory_space<vmem>>, vector<1x128xf32>
    %17 = vector.broadcast %14 : vector<64x1xf32> to vector<64x128xf32>
    %18 = arith.mulf %6, %17 : vector<64x128xf32>
    %19 = vector.broadcast %15 : vector<1x128xf32> to vector<64x128xf32>
    %20 = arith.mulf %18, %19 : vector<64x128xf32>
    %21 = vector.broadcast %16 : vector<1x128xf32> to vector<64x128xf32>
    %22 = arith.addf %20, %21 : vector<64x128xf32>
    %c0_9 = arith.constant 0 : index
    %c0_10 = arith.constant 0 : index
    %23 = vector.load %arg4[%c0_9, %c0_10] : memref<64x128xf32, #tpu.memory_space<vmem>>, vector<64x128xf32>
    tpu.vector_store %arg4[%c0_9, %c0_10], %22 {strides = array<i32>} : memref<64x128xf32, #tpu.memory_space<vmem>>, vector<64x128xf32>,
    return
  }
  func.func @transform_0(%arg0: i32) -> (i32, i32) {
    %c0_i32 = arith.constant 0 : i32
    %c0_i32_0 = arith.constant 0 : i32
    return %arg0, %c0_i32 : i32, i32
  }
  func.func @transform_1(%arg0: i32) -> (i32, i32) {
    %c0_i32 = arith.constant 0 : i32
    %c0_i32_0 = arith.constant 0 : i32
    %c0_i32_1 = arith.constant 0 : i32
    return %c0_i32, %c0_i32_0 : i32, i32
  }
  func.func @transform_2(%arg0: i32) -> (i32, i32) {
    %c0_i32 = arith.constant 0 : i32
    %c0_i32_0 = arith.constant 0 : i32
    %c0_i32_1 = arith.constant 0 : i32
    return %c0_i32, %c0_i32_0 : i32, i32
  }
  func.func @transform_3(%arg0: i32) -> (i32, i32) {
    %c0_i32 = arith.constant 0 : i32
    %c0_i32_0 = arith.constant 0 : i32
    return %arg0, %c0_i32 : i32, i32
  }
}

</mosaic_0001>

<llo_original>
// kernel: tpu_custom_call.1
$region0: #{tpu_custom_call.1}
  #allocation0 [shape = 'u32[]', space=smem, size = 0x4, offset = 0x4, fixed_abs, tag = 'smem constant byte address 0x4 - core index']
  #allocation1 [shape = 'u32[144,128]{1,0:T(1,128)}', space=vmem, size = 0x12000, scoped, tag = 'internal scratch']
  %s0 = inlined_call_operand.hbm [shape: f32[128,128], index: 0, kind: input, shape index: {}]
  %s1 = inlined_call_operand.vmem [shape: f32[1,128], index: 1, kind: input, shape index: {}]
  %s2 = inlined_call_operand.vmem [shape: f32[1,128], index: 2, kind: input, shape index: {}]
  %s3 = inlined_call_operand.hbm [shape: f32[128,128], index: 3, kind: output, shape index: {}]
  %s4 = sld [smem:[#allocation0]]
  $region49: #{tpu_custom_call.1} parent=0
    _
  %s6 = ssub.s32 1, %s4
  %s7 = scalar_select 0, %s6, %s4
  $region1: #{tpu_custom_call.1} parent=0
    #allocation2 [shape = 'u8[65536]{0}', space=vmem, size = 0x10000, scoped, tag = 'input window, operand 0']
    #allocation3 [shape = 's32[2]{0}', space=sflag, size = 0x8, scoped, tag = 'scoped memory for tpu_custom_call.1']
    #allocation4 [shape = 's32[2]{0}', space=sflag, size = 0x8, scoped, tag = 'scoped memory for tpu_custom_call.1']
    #allocation5 [shape = 'u8[65536]{0}', space=vmem, size = 0x10000, scoped, tag = 'output window, operand 0']
    %8 = vsyncpa [#allocation3], 0
    %s9 = scalar_lea.sflag [#allocation3], 1
    %10 = vsyncpa %s9, 0
    %11 = vsyncpa [#allocation4], 0
    %s12 = scalar_lea.sflag [#allocation4], 1
    %13 = vsyncpa %s12, 0
    loop: start=0, step=1, limit=4
    $region2: #{tpu_custom_call.1} parent=1 // loop_pre_header
      _
    $region3: #{tpu_custom_call.1} parent=1 // loop_header
      %s15 = sphi 0, %s19
      %p16 = scmp.ge.s32.totalorder %s15, 4
      %s25 = sphi 0, %s27
      %s28 = sphi 0, %s25
      %s29 = sphi 0, %s28
      %s45 = sphi 0, %s29
      %s49 = sphi 0, %s49
      %s51 = sphi 0, %s49
      %s52 = sphi 0, %s51
      %s66 = sphi 0, %s52
      %s70 = sphi 0, %s70
      %s72 = sphi 0, %s70
      %s73 = sphi 0, %s72
      %s87 = sphi 0, %s73
      %s93 = sphi 0, %s95
      %s96 = sphi 0, %s93
      %s97 = sphi 0, %s96
      %s113 = sphi 0, %s97
    $region4: #{tpu_custom_call.1} parent=1 // loop_header_branch
      %18 = sbr.rel (%p16) target = $region8
    $region5: #{tpu_custom_call.1} parent=1 // loop_body
      %s20 = ssub.s32 %s15, 1
      %s21 = ssub.s32 %s15, 2
      %s22 = sadd.s32 %s15, 1
      %s23 = ssub.s32 %s15, %s22
      %p24 = scmp.eq.s32.totalorder %s23, 0
      %s26 = sadd.s32 %s25, 1
      %s27 = scalar_select %p24, %s25, %s26
      %p30 = pneg %p24
      %p31 = scmp.eq.s32.totalorder %s15, 1
      %p32 = por %p30, %p31
      %p33 = scmp.ne.s32.totalorder %s25, %s28
      %p34 = scmp.eq.s32.totalorder %s15, 0
      %p35 = por %p33, %p34
      %p36 = scmp.ne.s32.totalorder %s25, %s28
      %p37 = scmp.eq.s32.totalorder %s20, 1
      %p38 = por %p36, %p37
      %p39 = scmp.ne.s32.totalorder %s28, %s29
      %p40 = scmp.eq.s32.totalorder %s20, 0
      %p41 = por %p39, %p40
      %p42 = scmp.ne.s32.totalorder %s28, %s29
      %p43 = scmp.eq.s32.totalorder %s21, 1
      %p44 = por %p42, %p43
      %p46 = scmp.ne.s32.totalorder %s29, %s45
      %p47 = scmp.eq.s32.totalorder %s21, 0
      %p48 = por %p46, %p47
      %s50 = sadd.s32 %s49, 1
      %p53 = scmp.eq.s32.totalorder %s15, 1
      %p54 = scmp.ne.s32.totalorder %s49, %s51
      %p55 = scmp.eq.s32.totalorder %s15, 0
      %p56 = por %p54, %p55
      %p57 = scmp.ne.s32.totalorder %s49, %s51
      %p58 = scmp.eq.s32.totalorder %s20, 1
      %p59 = por %p57, %p58
      %p60 = scmp.ne.s32.totalorder %s51, %s52
      %p61 = scmp.eq.s32.totalorder %s20, 0
      %p62 = por %p60, %p61
      %p63 = scmp.ne.s32.totalorder %s51, %s52
      %p64 = scmp.eq.s32.totalorder %s21, 1
      %p65 = por %p63, %p64
      %p67 = scmp.ne.s32.totalorder %s52, %s66
      %p68 = scmp.eq.s32.totalorder %s21, 0
      %p69 = por %p67, %p68
      %s71 = sadd.s32 %s70, 1
      %p74 = scmp.eq.s32.totalorder %s15, 1
      %p75 = scmp.ne.s32.totalorder %s70, %s72
      %p76 = scmp.eq.s32.totalorder %s15, 0
      %p77 = por %p75, %p76
      %p78 = scmp.ne.s32.totalorder %s70, %s72
      %p79 = scmp.eq.s32.totalorder %s20, 1
      %p80 = por %p78, %p79
      %p81 = scmp.ne.s32.totalorder %s72, %s73
      %p82 = scmp.eq.s32.totalorder %s20, 0
      %p83 = por %p81, %p82
      %p84 = scmp.ne.s32.totalorder %s72, %s73
      %p85 = scmp.eq.s32.totalorder %s21, 1
      %p86 = por %p84, %p85
      %p88 = scmp.ne.s32.totalorder %s73, %s87
      %p89 = scmp.eq.s32.totalorder %s21, 0
      %p90 = por %p88, %p89
      %s91 = ssub.s32 %s15, %s22
      %p92 = scmp.eq.s32.totalorder %s91, 0
      %s94 = sadd.s32 %s93, 1
      %s95 = scalar_select %p92, %s93, %s94
      %p98 = pneg %p92
      %p99 = scmp.eq.s32.totalorder %s15, 1
      %p100 = por %p98, %p99
      %p101 = scmp.ne.s32.totalorder %s93, %s96
      %p102 = scmp.eq.s32.totalorder %s15, 0
      %p103 = por %p101, %p102
      %p104 = scmp.ne.s32.totalorder %s93, %s96
      %p105 = scmp.eq.s32.totalorder %s20, 1
      %p106 = por %p104, %p105
      %p107 = scmp.ne.s32.totalorder %s96, %s97
      %p108 = scmp.eq.s32.totalorder %s20, 0
      %p109 = por %p107, %p108
      %p110 = scmp.ne.s32.totalorder %s96, %s97
      %p111 = scmp.eq.s32.totalorder %s21, 1
      %p112 = por %p110, %p111
      %p114 = scmp.ne.s32.totalorder %s97, %s113
      %p115 = scmp.eq.s32.totalorder %s21, 0
      %p116 = por %p114, %p115
      %p117 = scmp.le.s32.totalorder 1, %s15
      %p118 = scmp.lt.s32.totalorder %s15, 3
      %p119 = pnand %p117, %p118
      %p120 = pneg %p119
      // Predicated region
      $region9: #{tpu_custom_call.1} parent=5 // pred_check
        _
      $region10: #{tpu_custom_call.1} parent=5 // pred_check_branch
        %122 = sbr.rel (%p119) target = $region12
      $region11: #{tpu_custom_call.1} parent=5 // pred_region
        %s123 = ssub.s32 %s15, 1
        // Predicated region
        $region13: #{tpu_custom_call.1} parent=11 // pred_check
          %p124 = pneg %p62
        $region14: #{tpu_custom_call.1} parent=11 // pred_check_branch
          %126 = sbr.rel (%p124) target = $region16
        $region15: #{tpu_custom_call.1} parent=11 // pred_region
          _
        $region16: #{tpu_custom_call.1} parent=11 // pred_fallthru
          _
        // Predicated region
        $region17: #{tpu_custom_call.1} parent=11 // pred_check
          %p127 = pneg %p83
        $region18: #{tpu_custom_call.1} parent=11 // pred_check_branch
          %129 = sbr.rel (%p127) target = $region20
        $region19: #{tpu_custom_call.1} parent=11 // pred_region
          _
        $region20: #{tpu_custom_call.1} parent=11 // pred_fallthru
          _
      $region12: #{tpu_custom_call.1} parent=5 // pred_fallthru
        _
      %p130 = scmp.lt.s32.totalorder %s15, 2
      // Predicated region
      $region21: #{tpu_custom_call.1} parent=5 // pred_check
        %p131 = pneg %p130
      $region22: #{tpu_custom_call.1} parent=5 // pred_check_branch
        %133 = sbr.rel (%p131) target = $region24
      $region23: #{tpu_custom_call.1} parent=5 // pred_region
        // Predicated region
        $region25: #{tpu_custom_call.1} parent=23 // pred_check
          %p134 = pneg %p35
        $region26: #{tpu_custom_call.1} parent=23 // pred_check_branch
          %136 = sbr.rel (%p134) target = $region28
        $region27: #{tpu_custom_call.1} parent=23 // pred_region
          %s137 = sand.u32 %s25, 1
          %s138 = scalar_lea.sflag [#allocation3], %s137
          %s139 = sand.u32 %s25, 1
          %s140 = smul.addr %s139, 64
          %s141 = scalar_lea.vmem [#allocation2], %s140
          %s142 = smul.u32 8, %s15
          %s144 = ssub.s32 1024, 1024
          %145 = vsyncadd %s138, %s144
          %s146 = smul.addr %s142, 128
          %s147 = scalar_lea.hbm %s0, %s146
          %s148 = sshll.u32 %s141, 4
          %s149 = int_to_ptr.vmem [resolvable:$true] %s148
          %154 = dma.hbm_to_vmem [thread:$0]  %s147, 1024, %s149, %s138, 128, 128, 8
        $region28: #{tpu_custom_call.1} parent=23 // pred_fallthru
          _
      $region24: #{tpu_custom_call.1} parent=5 // pred_fallthru
        _
      %p155 = scmp.le.s32.totalorder 1, %s15
      %p156 = scmp.lt.s32.totalorder %s15, 3
      %p157 = pnand %p155, %p156
      %p158 = pneg %p157
      // Predicated region
      $region29: #{tpu_custom_call.1} parent=5 // pred_check
        _
      $region30: #{tpu_custom_call.1} parent=5 // pred_check_branch
        %160 = sbr.rel (%p157) target = $region32
      $region31: #{tpu_custom_call.1} parent=5 // pred_region
        %s161 = ssub.s32 %s15, 1
        %s162 = sand.u32 %s28, 1
        %s163 = scalar_lea.sflag [#allocation3], %s162
        %s164 = sand.u32 %s28, 1
        %s165 = smul.addr %s164, 64
        %s166 = scalar_lea.vmem [#allocation2], %s165
        // Predicated region
        $region33: #{tpu_custom_call.1} parent=31 // pred_check
          %p167 = pneg %p41
        $region34: #{tpu_custom_call.1} parent=31 // pred_check_branch
          %169 = sbr.rel (%p167) target = $region36
        $region35: #{tpu_custom_call.1} parent=31 // pred_region
          %170 = dma.done %s163, 1024
        $region36: #{tpu_custom_call.1} parent=31 // pred_fallthru
          _
        %s171 = sand.u32 %s28, 1
        %s172 = scalar_lea.sflag [#allocation3], %s171
        %s173 = sand.u32 %s28, 1
        %s174 = smul.addr %s173, 64
        %s175 = scalar_lea.vmem [#allocation2], %s174
        %p176 = pneg %p41
        %p177 = pneg %p38
        %p178 = pneg %p62
        %p179 = pneg %p59
        %p180 = pneg %p83
        %p181 = pneg %p80
        %p182 = pneg %p109
        %p183 = pneg %p106
        %s184 = sand.u32 %s96, 1
        %s185 = scalar_lea.sflag [#allocation4], %s184
        %s186 = sand.u32 %s96, 1
        %s187 = smul.addr %s186, 64
        %s188 = scalar_lea.vmem [#allocation5], %s187
        %s189 = smul.u32 8, %s20
        %s190 = smul.u32 8, %s20
        %v191 = vld [vmem:[%s166] sm:$0xff]
        %v192 = vld [vmem:[%s166 + $0x8] sm:$0xff]
        %v193 = vld [vmem:[%s166 + $0x10] sm:$0xff]
        %v194 = vld [vmem:[%s166 + $0x18] sm:$0xff]
        %v195 = vld [vmem:[%s166 + $0x20] sm:$0xff]
        %v196 = vld [vmem:[%s166 + $0x28] sm:$0xff]
        %v197 = vld [vmem:[%s166 + $0x30] sm:$0xff]
        %v198 = vld [vmem:[%s166 + $0x38] sm:$0xff]
        %199 = vadd.xlane.f32.xlu0 %v191
        %v200 = vpop.xlane.xlu0 %199
        %201 = vadd.xlane.f32.xlu0 %v192
        %v202 = vpop.xlane.xlu0 %201
        %203 = vadd.xlane.f32.xlu0 %v193
        %v204 = vpop.xlane.xlu0 %203
        %205 = vadd.xlane.f32.xlu0 %v194
        %v206 = vpop.xlane.xlu0 %205
        %207 = vadd.xlane.f32.xlu0 %v195
        %v208 = vpop.xlane.xlu0 %207
        %209 = vadd.xlane.f32.xlu0 %v196
        %v210 = vpop.xlane.xlu0 %209
        %211 = vadd.xlane.f32.xlu0 %v197
        %v212 = vpop.xlane.xlu0 %211
        %213 = vadd.xlane.f32.xlu0 %v198
        %v214 = vpop.xlane.xlu0 %213
        %v215 = vmul.f32 %v200, 0.0078125
        %v216 = vmul.f32 %v202, 0.0078125
        %v217 = vmul.f32 %v204, 0.0078125
        %v218 = vmul.f32 %v206, 0.0078125
        %v219 = vmul.f32 %v208, 0.0078125
        %v220 = vmul.f32 %v210, 0.0078125
        %v221 = vmul.f32 %v212, 0.0078125
        %v222 = vmul.f32 %v214, 0.0078125
        %v223 = vsub.f32 %v191, %v215
        %v224 = vsub.f32 %v192, %v216
        %v225 = vsub.f32 %v193, %v217
        %v226 = vsub.f32 %v194, %v218
        %v227 = vsub.f32 %v195, %v219
        %v228 = vsub.f32 %v196, %v220
        %v229 = vsub.f32 %v197, %v221
        %v230 = vsub.f32 %v198, %v222
        %v231 = vmul.f32 %v223, %v223
        %v232 = vmul.f32 %v224, %v224
        %v233 = vmul.f32 %v225, %v225
        %v234 = vmul.f32 %v226, %v226
        %v235 = vmul.f32 %v227, %v227
        %v236 = vmul.f32 %v228, %v228
        %v237 = vmul.f32 %v229, %v229
        %v238 = vmul.f32 %v230, %v230
        %239 = vadd.xlane.f32.xlu0 %v231
        %v240 = vpop.xlane.xlu0 %239
        %241 = vadd.xlane.f32.xlu0 %v232
        %v242 = vpop.xlane.xlu0 %241
        %243 = vadd.xlane.f32.xlu0 %v233
        %v244 = vpop.xlane.xlu0 %243
        %245 = vadd.xlane.f32.xlu0 %v234
        %v246 = vpop.xlane.xlu0 %245
        %247 = vadd.xlane.f32.xlu0 %v235
        %v248 = vpop.xlane.xlu0 %247
        %249 = vadd.xlane.f32.xlu0 %v236
        %v250 = vpop.xlane.xlu0 %249
        %251 = vadd.xlane.f32.xlu0 %v237
        %v252 = vpop.xlane.xlu0 %251
        %253 = vadd.xlane.f32.xlu0 %v238
        %v254 = vpop.xlane.xlu0 %253
        %v255 = vmul.f32 %v240, 0.0078125
        %v256 = vmul.f32 %v242, 0.0078125
        %v257 = vmul.f32 %v244, 0.0078125
        %v258 = vmul.f32 %v246, 0.0078125
        %v259 = vmul.f32 %v248, 0.0078125
        %v260 = vmul.f32 %v250, 0.0078125
        %v261 = vmul.f32 %v252, 0.0078125
        %v262 = vmul.f32 %v254, 0.0078125
        %v263 = vadd.f32 %v255, 1e-05
        %v264 = vadd.f32 %v256, 1e-05
        %v265 = vadd.f32 %v257, 1e-05
        %v266 = vadd.f32 %v258, 1e-05
        %v267 = vadd.f32 %v259, 1e-05
        %v268 = vadd.f32 %v260, 1e-05
        %v269 = vadd.f32 %v261, 1e-05
        %v270 = vadd.f32 %v262, 1e-05
        %v271 = vrsqrt.pop %v263
        %v272 = vrsqrt.pop %v264
        %v273 = vrsqrt.pop %v265
        %v274 = vrsqrt.pop %v266
        %v275 = vrsqrt.pop %v267
        %v276 = vrsqrt.pop %v268
        %v277 = vrsqrt.pop %v269
        %v278 = vrsqrt.pop %v270
        %v279 = vld [vmem:[%s1] sm:$0x1]
        %v280 = vld [vmem:[%s2] sm:$0x1]
        %v281 = vmul.f32 %v223, %v271
        %v282 = vmul.f32 %v224, %v272
        %v283 = vmul.f32 %v225, %v273
        %v284 = vmul.f32 %v226, %v274
        %v285 = vmul.f32 %v227, %v275
        %v286 = vmul.f32 %v228, %v276
        %v287 = vmul.f32 %v229, %v277
        %v288 = vmul.f32 %v230, %v278
        %v290 = vlaneseq
        %v291 = vshrl.u32 %v290, 7
        %v292 = vsub.s32 0, %v291
        %v293 = vrot.slane %v279, %v292
        %v295 = vmul.f32 %v281, %v293
        %v296 = vmul.f32 %v282, %v293
        %v297 = vmul.f32 %v283, %v293
        %v298 = vmul.f32 %v284, %v293
        %v299 = vmul.f32 %v285, %v293
        %v300 = vmul.f32 %v286, %v293
        %v301 = vmul.f32 %v287, %v293
        %v302 = vmul.f32 %v288, %v293
        %v304 = vlaneseq
        %v305 = vshrl.u32 %v304, 7
        %v306 = vsub.s32 0, %v305
        %v307 = vrot.slane %v280, %v306
        %v309 = vadd.f32 %v295, %v307
        %v310 = vadd.f32 %v296, %v307
        %v311 = vadd.f32 %v297, %v307
        %v312 = vadd.f32 %v298, %v307
        %v313 = vadd.f32 %v299, %v307
        %v314 = vadd.f32 %v300, %v307
        %v315 = vadd.f32 %v301, %v307
        %v316 = vadd.f32 %v302, %v307
        %317 = vst [vmem:[%s188] sm:$0xff] %v309
        %318 = vst [vmem:[%s188 + $0x8] sm:$0xff] %v310
        %319 = vst [vmem:[%s188 + $0x10] sm:$0xff] %v311
        %320 = vst [vmem:[%s188 + $0x18] sm:$0xff] %v312
        %321 = vst [vmem:[%s188 + $0x20] sm:$0xff] %v313
        %322 = vst [vmem:[%s188 + $0x28] sm:$0xff] %v314
        %323 = vst [vmem:[%s188 + $0x30] sm:$0xff] %v315
        %324 = vst [vmem:[%s188 + $0x38] sm:$0xff] %v316
        %s325 = sand.u32 %s96, 1
        %s326 = scalar_lea.sflag [#allocation4], %s325
        %s327 = sand.u32 %s96, 1
        %s328 = smul.addr %s327, 64
        %s329 = scalar_lea.vmem [#allocation5], %s328
        // Predicated region
        $region37: #{tpu_custom_call.1} parent=31 // pred_check
          %p330 = pneg %p106
        $region38: #{tpu_custom_call.1} parent=31 // pred_check_branch
          %332 = sbr.rel (%p330) target = $region40
        $region39: #{tpu_custom_call.1} parent=31 // pred_region
          %s333 = smul.u32 8, %s20
          %s335 = ssub.s32 1024, 1024
          %336 = vsyncadd %s326, %s335
          %s337 = smul.addr %s333, 128
          %s338 = scalar_lea.hbm %s3, %s337
          %s339 = sshll.u32 %s329, 4
          %s340 = int_to_ptr.vmem [resolvable:$true] %s339
          %345 = dma.vmem_to_hbm [thread:$0]  %s340, 1024, %s338, %s326, 128, 128, 8
        $region40: #{tpu_custom_call.1} parent=31 // pred_fallthru
          _
      $region32: #{tpu_custom_call.1} parent=5 // pred_fallthru
        _
      %p346 = scmp.le.s32.totalorder 2, %s15
      // Predicated region
      $region41: #{tpu_custom_call.1} parent=5 // pred_check
        %p347 = pneg %p346
      $region42: #{tpu_custom_call.1} parent=5 // pred_check_branch
        %349 = sbr.rel (%p347) target = $region44
      $region43: #{tpu_custom_call.1} parent=5 // pred_region
        %s350 = ssub.s32 %s15, 2
        // Predicated region
        $region45: #{tpu_custom_call.1} parent=43 // pred_check
          %p351 = pneg %p112
        $region46: #{tpu_custom_call.1} parent=43 // pred_check_branch
          %353 = sbr.rel (%p351) target = $region48
        $region47: #{tpu_custom_call.1} parent=43 // pred_region
          %s354 = sand.u32 %s97, 1
          %s355 = scalar_lea.sflag [#allocation4], %s354
          %s356 = sand.u32 %s97, 1
          %s357 = smul.addr %s356, 64
          %s358 = scalar_lea.vmem [#allocation5], %s357
          %359 = dma.done %s355, 1024
        $region48: #{tpu_custom_call.1} parent=43 // pred_fallthru
          _
      $region44: #{tpu_custom_call.1} parent=5 // pred_fallthru
        _
    $region6: #{tpu_custom_call.1} parent=1 // loop_footer
      %s19 = sadd.s32 1, %s15
    $region7: #{tpu_custom_call.1} parent=1 // loop_footer_branch
      %14 = sbr.rel target = $region3
    $region8: #{tpu_custom_call.1} parent=1 // loop_exit
      _
    %360 = vsyncpa [#allocation3], 1
    %s361 = scalar_lea.sflag [#allocation3], 1
    %362 = vsyncpa %s361, 1
    %363 = vsyncpa [#allocation4], 1
    %s364 = scalar_lea.sflag [#allocation4], 1
    %365 = vsyncpa %s364, 1

</llo_original>
